<compile_context>
chip_gen: v5e
topology: v5e:2x2
jax: 0.10.0
libtpu: 0.0.40
codegen_flags: <defaults>
</compile_context>

<pallas_src>
import numpy as np
import jax
import jax.numpy as jnp
from jax import lax
from jax.experimental import pallas as pl
from jax.experimental.pallas import tpu as pltpu


# ----------------------------------------------------------------------------
# exp_head stage 1 (parallel over L): hoisted input projection
#   gi[l] = W_ih(3Hg, H) @ x_l(H, N) + b_ih(3Hg, 1)      -> (L, 3Hg, N) bf16
# Gates are stacked [r; z; n] on the leading (sublane) axis; N (= T) sits on
# lanes so downstream gate math is lane-dense.
# ----------------------------------------------------------------------------
def _gi_proj_kernel(x_ref, wih_ref, bih_ref, gi_ref):
    gi = jnp.dot(wih_ref[...], x_ref[0],                 # (3Hg,H)bf16 @ (H,N)bf16
                 preferred_element_type=jnp.float32) + bih_ref[...]
    gi_ref[0] = gi.astype(gi_ref.dtype)                  # bf16 HBM writeback


# ----------------------------------------------------------------------------
# exp_head stage 2 (grid = parallel N tiles; L folded into an in-kernel loop):
#   GRU recurrence + exp_linear + sigmoid + attention-mask, fused.
# Hidden state h is (Hg, tn) f32: the GRU "batch" (= T) lives on lanes.
# ----------------------------------------------------------------------------
def _gru_exp_kernel(gi_ref, m_ref, whh_ref, bhh_ref, wexp_ref, bexp_ref, out_ref):
    L, G3, tn = gi_ref.shape
    Hg = G3 // 3                                          # NOTE: Hg should be a multiple of 8

    whh = whh_ref[...]                                    # (3Hg, Hg) bf16, resident
    bhh = bhh_ref[...]                                    # (3Hg, 1)  f32
    wexp = wexp_ref[...].astype(jnp.bfloat16)             # (1, Hg)
    bexp = bexp_ref[...]                                  # (1, 1)

    def step(l, h):                                       # h: (Hg, tn) f32
        # One fused recurrent matmul for all three gates (bf16 in, f32 acc).
        gh = jnp.dot(whh, h.astype(jnp.bfloat16),
                     preferred_element_type=jnp.float32) + bhh        # (3Hg, tn)
        gi = gi_ref[l].astype(jnp.float32)                             # (3Hg, tn)
        r = jax.nn.sigmoid(gi[:Hg] + gh[:Hg])
        z = jax.nn.sigmoid(gi[Hg:2 * Hg] + gh[Hg:2 * Hg])
        n = jnp.tanh(gi[2 * Hg:] + r * gh[2 * Hg:])
        h_new = (1.0 - z) * n + z * h

        # exp_linear (Hg -> 1) + sigmoid + attention mask, lane-dense row store
        # into the resident (L, tn) output block (VMEM; HBM writeback is one
        # dense slab at the end of the grid step).
        logit = jnp.dot(wexp, h_new.astype(jnp.bfloat16),
                        preferred_element_type=jnp.float32) + bexp     # (1, tn)
        out_ref[pl.ds(l, 1), :] = jax.nn.sigmoid(logit) * m_ref[pl.ds(l, 1), :]
        return h_new

    lax.fori_loop(0, L, step, jnp.zeros((Hg, tn), jnp.float32),        # h0 = 0 (PyTorch default)
                  unroll=L <= 8)


def exp_head_forward(seq_out_t, attention_mask, params):
    # seq_out_t: (L, H, N) bf16 with L = B (GRU time, batch_first=False), N = T.
    L, H, N = seq_out_t.shape
    G3, Hg = params["gru_whh"].shape                      # (3*Hg, Hg)

    # ---- Stage 1: one big parallel projection over all L steps ----
    gi = pl.pallas_call(
        _gi_proj_kernel,
        out_shape=jax.ShapeDtypeStruct((L, G3, N), jnp.bfloat16),
        grid_spec=pltpu.PrefetchScalarGridSpec(
            num_scalar_prefetch=0,
            grid=(L,),
            in_specs=[
                pl.BlockSpec((1, H, N), lambda l: (l, 0, 0)),   # x_l   (bf16)
                pl.BlockSpec((G3, H), lambda l: (0, 0)),        # W_ih  (bf16)
                pl.BlockSpec((G3, 1), lambda l: (0, 0)),        # b_ih  (f32)
            ],
            out_specs=pl.BlockSpec((1, G3, N), lambda l: (l, 0, 0)),
        ),
        compiler_params=pltpu.CompilerParams(
            dimension_semantics=("parallel",)),
    )(seq_out_t, params["gru_wih"], params["gru_bih"])

    # ---- Stage 2: recurrence folded into the kernel; grid = parallel N tiles ----
    # Single full-width tile by default (best on single-TC v5e/v6e).  Only for
    # large, 128-aligned T split into two tiles so v7x's two TensorCores can
    # share the parallel axis.
    tn = N // 2 if (N >= 1024 and N % 256 == 0) else N
    num_n = N // tn
    mask = attention_mask.astype(jnp.float32)             # (L, N)

    # Size the scoped VMEM limit from the actual blocks (v7x has 64 MiB VMEM).
    gi_blk = L * G3 * tn * 2                               # bf16 gi block
    io_blk = 2 * L * tn * 4                                # mask + out blocks (f32)
    wts = G3 * Hg * 2 + G3 * 4 + Hg * 4 + 4
    vmem_limit = int(min(max(2 * (gi_blk + io_blk) + wts + (8 << 20), 32 << 20),
                         64 << 20))

    out = pl.pallas_call(
        _gru_exp_kernel,
        out_shape=jax.ShapeDtypeStruct((L, N), jnp.float32),
        grid_spec=pltpu.PrefetchScalarGridSpec(
            num_scalar_prefetch=0,
            grid=(num_n,),
            in_specs=[
                pl.BlockSpec((L, G3, tn), lambda nb: (0, 0, nb)),  # gi (bf16)
                pl.BlockSpec((L, tn), lambda nb: (0, nb)),         # mask
                pl.BlockSpec((G3, Hg), lambda nb: (0, 0)),         # W_hh (bf16)
                pl.BlockSpec((G3, 1), lambda nb: (0, 0)),          # b_hh
                pl.BlockSpec((1, Hg), lambda nb: (0, 0)),          # exp W
                pl.BlockSpec((1, 1), lambda nb: (0, 0)),           # exp b
            ],
            out_specs=pl.BlockSpec((L, tn), lambda nb: (0, nb)),
        ),
        compiler_params=pltpu.CompilerParams(
            dimension_semantics=("parallel",),
            vmem_limit_bytes=vmem_limit),
    )(gi, mask, params["gru_whh"], params["gru_bhh"],
      params["exp_w"], params["exp_b"])

    # torch `.squeeze()` of the (B, T, 1) output; assumes B > 1 and T > 1.
    return out                                            # (B, T)


# ----------------------------------------------------------------------------
# cls_head: pooler(tanh) -> Dropout -> Linear -> Tanh -> Linear -> Softmax,
# fused into one kernel (whole problem is smaller than a single MXU tile).
# ----------------------------------------------------------------------------
def _cls_head_kernel(x_ref, pw_ref, pb_ref, w1_ref, b1_ref, w2_ref, b2_ref, out_ref):
    x = x_ref[...].astype(jnp.bfloat16)                                # (B, H)
    pooled = jnp.tanh(jnp.dot(x, pw_ref[...],
                              preferred_element_type=jnp.float32) + pb_ref[...])
    # Dropout(p=0.1) is the identity at inference time.
    # TODO(synk): training-mode dropout (RNG mask) not implemented.
    h = jnp.tanh(jnp.dot(pooled.astype(jnp.bfloat16), w1_ref[...],
                         preferred_element_type=jnp.float32) + b1_ref[...])
    logits = jnp.dot(h, w2_ref[...], preferred_element_type=jnp.float32) + b2_ref[...]
    m = jnp.max(logits, axis=-1, keepdims=True)
    e = jnp.exp(logits - m)
    # Exact reciprocal: free at (B, num_labels) size and keeps sum(probs) == 1.
    out_ref[...] = (e / jnp.sum(e, axis=-1, keepdims=True)).astype(out_ref.dtype)


def cls_head_forward(cls_hidden, params):
    B = cls_hidden.shape[0]
    num_labels = params["cls_w2"].shape[1]
    vspec = pl.BlockSpec(memory_space=pltpu.MemorySpace.VMEM)
    return pl.pallas_call(
        _cls_head_kernel,
        out_shape=jax.ShapeDtypeStruct((B, num_labels), jnp.float32),
        in_specs=[vspec] * 7,
        out_specs=vspec,
    )(cls_hidden, params["pool_w"], params["pool_b"],
      params["cls_w1"], params["cls_b1"], params["cls_w2"], params["cls_b2"])


# ----------------------------------------------------------------------------
# Glue: input assembly (mirrors the [CLS] q [SEP] d concat + PaddedSequence)
# ----------------------------------------------------------------------------
def build_inputs(query, document_batch, *, max_length, pad_id, cls_id, sep_id):
    assert len(query) == len(document_batch)
    seqs = []
    for q, d in zip(query, document_batch):
        if len(q) + len(d) + 2 > max_length:
            d = d[: max_length - len(q) - 2]
        seqs.append(np.concatenate([[cls_id], np.asarray(q), [sep_id],
                                    np.asarray(d)]).astype(np.int32))
    T = max(len(s) for s in seqs)
    ids = np.full((len(seqs), T), pad_id, dtype=np.int32)
    mask = np.zeros((len(seqs), T), dtype=np.float32)
    for i, s in enumerate(seqs):
        ids[i, : len(s)] = s
        mask[i, : len(s)] = 1.0
    return jnp.asarray(ids), jnp.asarray(mask)


def init_params(key, *, vocab_size, hidden, dim_exp_gru, dim_cls_linear, num_labels):
    keys = jax.random.split(key, 10)
    Hg = dim_exp_gru

    def xavier(k, shape):  # xavier_normal_: std uses the same fan sum either layout
        std = (2.0 / (shape[0] + shape[1])) ** 0.5
        return std * jax.random.normal(k, shape, jnp.float32)

    kg = 1.0 / (Hg ** 0.5)                     # PyTorch GRU default uniform init
    uni = lambda k, shape: jax.random.uniform(k, shape, jnp.float32, -kg, kg)

    return dict(
        embed=0.02 * jax.random.normal(keys[0], (vocab_size, hidden), jnp.float32),
        # Pooler / cls_head weights: big matmul operands in bf16 (f32 accumulate).
        pool_w=xavier(keys[1], (hidden, hidden)).astype(jnp.bfloat16),
        pool_b=jnp.zeros((1, hidden), jnp.float32),
        # GRU weights gate-stacked [r; z; n] along the leading axis so each step
        # runs a single MXU matmul per operand; bf16 in, f32 accumulate.
        gru_wih=uni(keys[2], (3 * Hg, hidden)).astype(jnp.bfloat16),   # W_i{r,z,n}
        gru_whh=uni(keys[3], (3 * Hg, Hg)).astype(jnp.bfloat16),       # W_h{r,z,n}
        gru_bih=uni(keys[4], (3 * Hg, 1)),
        gru_bhh=uni(keys[5], (3 * Hg, 1)),
        exp_w=xavier(keys[6], (1, Hg)),        # nn.init.xavier_normal_
        exp_b=jnp.zeros((1, 1), jnp.float32),
        cls_w1=xavier(keys[7], (hidden, dim_cls_linear)).astype(jnp.bfloat16),
        cls_b1=jnp.zeros((1, dim_cls_linear), jnp.float32),
        cls_w2=xavier(keys[8], (dim_cls_linear, num_labels)),
        cls_b2=jnp.zeros((1, num_labels), jnp.float32),
    )


@jax.jit
def bert_mtl_forward(input_ids, attention_mask, params):
    # ---- bare_bert stand-in ----
    # TODO(synk): the pretrained (fp16) BertModel encoder from `bert_dir` is not
    # replicated; a deterministic embedding + BERT-style tanh pooler (fused into
    # the cls_head kernel) stands in for (sequence_output, pooled_output).
    emb = params["embed"][input_ids] * attention_mask[..., None]      # (B, T, H) f32
    # Pre-transpose to (B, H, T) so stage 1's contraction needs no in-kernel
    # transpose; bf16 halves its HBM traffic.
    seq_out_t = jnp.swapaxes(emb, 1, 2).astype(jnp.bfloat16)          # (B, H, T) bf16
    cls_hidden = emb[:, 0, :]                                         # (B, H) f32

    exp_output = exp_head_forward(seq_out_t, attention_mask, params)  # (B, T)
    cls_output = cls_head_forward(cls_hidden, params)                 # (B, num_labels)
    return cls_output, exp_output, attention_mask


if __name__ == "__main__":
    B, H, HG, D1, NLAB = 2, 32, 16, 16, 2
    VOCAB, MAX_LEN = 200, 512
    PAD_ID, CLS_ID, SEP_ID = 0, 101, 102

    key = jax.random.PRNGKey(0)
    k_tok, k_par = jax.random.split(key)
    tk = jax.random.split(k_tok, 4)
    query = [np.asarray(jax.random.randint(tk[0], (3,), 3, 100)),
             np.asarray(jax.random.randint(tk[1], (4,), 3, 100))]
    docs = [np.asarray(jax.random.randint(tk[2], (5,), 3, 100)),
            np.asarray(jax.random.randint(tk[3], (6,), 3, 100))]

    input_ids, attention_mask = build_inputs(
        query, docs, max_length=MAX_LEN, pad_id=PAD_ID, cls_id=CLS_ID, sep_id=SEP_ID)

    params = init_params(k_par, vocab_size=VOCAB, hidden=H,
                         dim_exp_gru=HG, dim_cls_linear=D1, num_labels=NLAB)

    cls_out, exp_out, mask_out = jax.block_until_ready(
        bert_mtl_forward(input_ids, attention_mask, params))

    # mirrors: assert torch.all(cls_output == cls_output) / exp_output NaN checks
    assert bool(jnp.all(cls_out == cls_out))
    assert bool(jnp.all(exp_out == exp_out))
    assert cls_out.shape == (B, NLAB)
    assert exp_out.shape == attention_mask.shape
    print("KERNEL_OK")
</pallas_src>

<mosaic_0001>
module attributes {stable_mosaic.version = 11 : i64} {
  func.func @_gi_proj_kernel(%arg0: i32, %arg1: memref<1x32x12xbf16, #tpu.memory_space<vmem>>, %arg2: memref<48x32xbf16, #tpu.memory_space<vmem>>, %arg3: memref<48x1xf32, #tpu.memory_space<vmem>>, %arg4: memref<1x48x12xbf16, #tpu.memory_space<vmem>>) attributes {dimension_semantics = [#tpu.dimension_semantics<parallel>], iteration_bounds = array<i64: 2>, scalar_prefetch = 0 : i64, scratch_operands = 0 : i64, tpu.core_type = #tpu.core_type<tc>, window_params = [{transform_indices = @transform_0, window_bounds = array<i64: 1, 32, 12>}, {pipeline_mode = #tpu.pipeline_mode<synchronous>, transform_indices = @transform_1, window_bounds = array<i64: 48, 32>}, {pipeline_mode = #tpu.pipeline_mode<synchronous>, transform_indices = @transform_2, window_bounds = array<i64: 48, 1>}, {transform_indices = @transform_3, window_bounds = array<i64: 1, 48, 12>}]} {
    %c0 = arith.constant 0 : index
    %c0_0 = arith.constant 0 : index
    %0 = vector.load %arg2[%c0, %c0_0] : memref<48x32xbf16, #tpu.memory_space<vmem>>, vector<48x32xbf16>
    %c0_1 = arith.constant 0 : index
    %c0_2 = arith.constant 0 : index
    %c0_3 = arith.constant 0 : index
    %1 = vector.load %arg1[%c0_1, %c0_2, %c0_3] : memref<1x32x12xbf16, #tpu.memory_space<vmem>>, vector<1x32x12xbf16>
    %2 = vector.shape_cast %1 : vector<1x32x12xbf16> to vector<32x12xbf16>
    %cst = arith.constant dense<0.000000e+00> : vector<48x12xf32>
    %3 = tpu.matmul %0, %2, %cst {dimension_numbers = #tpu.dot_dimension_numbers<[1], [0], [0], [1], [0, 0, 1, 1], [], []>} : vector<48x32xbf16>, vector<32x12xbf16>, vector<48x12xf32> -> vector<48x12xf32>
    %c0_4 = arith.constant 0 : index
    %c0_5 = arith.constant 0 : index
    %4 = vector.load %arg3[%c0_4, %c0_5] : memref<48x1xf32, #tpu.memory_space<vmem>>, vector<48x1xf32>
    %5 = vector.broadcast %4 : vector<48x1xf32> to vector<48x12xf32>
    %6 = arith.addf %3, %5 : vector<48x12xf32>
    %7 = arith.truncf %6 : vector<48x12xf32> to vector<48x12xbf16>
    %c0_6 = arith.constant 0 : index
    %c0_7 = arith.constant 0 : index
    %c0_8 = arith.constant 0 : index
    %8 = vector.load %arg4[%c0_6, %c0_7, %c0_8] : memref<1x48x12xbf16, #tpu.memory_space<vmem>>, vector<1x48x12xbf16>
    %9 = vector.shape_cast %8 : vector<1x48x12xbf16> to vector<48x12xbf16>
    %10 = vector.shape_cast %7 : vector<48x12xbf16> to vector<1x48x12xbf16>
    tpu.vector_store %arg4[%c0_6, %c0_7, %c0_8], %10 {strides = array<i32>} : memref<1x48x12xbf16, #tpu.memory_space<vmem>>, vector<1x48x12xbf16>,
    return
  }
  func.func @transform_0(%arg0: i32) -> (i32, i32, i32) {
    %c0_i32 = arith.constant 0 : i32
    %c0_i32_0 = arith.constant 0 : i32
    %c0_i32_1 = arith.constant 0 : i32
    return %arg0, %c0_i32, %c0_i32_0 : i32, i32, i32
  }
  func.func @transform_1(%arg0: i32) -> (i32, i32) {
    %c0_i32 = arith.constant 0 : i32
    %c0_i32_0 = arith.constant 0 : i32
    %c0_i32_1 = arith.constant 0 : i32
    return %c0_i32, %c0_i32_0 : i32, i32
  }
  func.func @transform_2(%arg0: i32) -> (i32, i32) {
    %c0_i32 = arith.constant 0 : i32
    %c0_i32_0 = arith.constant 0 : i32
    %c0_i32_1 = arith.constant 0 : i32
    return %c0_i32, %c0_i32_0 : i32, i32
  }
  func.func @transform_3(%arg0: i32) -> (i32, i32, i32) {
    %c0_i32 = arith.constant 0 : i32
    %c0_i32_0 = arith.constant 0 : i32
    %c0_i32_1 = arith.constant 0 : i32
    return %arg0, %c0_i32, %c0_i32_0 : i32, i32, i32
  }
}

module attributes {stable_mosaic.version = 11 : i64} {
  func.func @_gru_exp_kernel(%arg0: i32, %arg1: memref<2x48x12xbf16, #tpu.memory_space<vmem>>, %arg2: memref<2x12xf32, #tpu.memory_space<vmem>>, %arg3: memref<48x16xbf16, #tpu.memory_space<vmem>>, %arg4: memref<48x1xf32, #tpu.memory_space<vmem>>, %arg5: memref<1x16xf32, #tpu.memory_space<vmem>>, %arg6: memref<1x1xf32, #tpu.memory_space<vmem>>, %arg7: memref<2x12xf32, #tpu.memory_space<vmem>>) attributes {dimension_semantics = [#tpu.dimension_semantics<parallel>], iteration_bounds = array<i64: 1>, scalar_prefetch = 0 : i64, scratch_operands = 0 : i64, tpu.core_type = #tpu.core_type<tc>, window_params = [{transform_indices = @transform_0, window_bounds = array<i64: 2, 48, 12>}, {transform_indices = @transform_1, window_bounds = array<i64: 2, 12>}, {pipeline_mode = #tpu.pipeline_mode<synchronous>, transform_indices = @transform_2, window_bounds = array<i64: 48, 16>}, {pipeline_mode = #tpu.pipeline_mode<synchronous>, transform_indices = @transform_3, window_bounds = array<i64: 48, 1>}, {pipeline_mode = #tpu.pipeline_mode<synchronous>, transform_indices = @transform_4, window_bounds = array<i64: 1, 16>}, {pipeline_mode = #tpu.pipeline_mode<synchronous>, transform_indices = @transform_5, window_bounds = array<i64: 1, 1>}, {transform_indices = @transform_6, window_bounds = array<i64: 2, 12>}]} {
    %c0 = arith.constant 0 : index
    %c0_0 = arith.constant 0 : index
    %0 = vector.load %arg3[%c0, %c0_0] : memref<48x16xbf16, #tpu.memory_space<vmem>>, vector<48x16xbf16>
    %c0_1 = arith.constant 0 : index
    %c0_2 = arith.constant 0 : index
    %1 = vector.load %arg4[%c0_1, %c0_2] : memref<48x1xf32, #tpu.memory_space<vmem>>, vector<48x1xf32>
    %c0_3 = arith.constant 0 : index
    %c0_4 = arith.constant 0 : index
    %2 = vector.load %arg5[%c0_3, %c0_4] : memref<1x16xf32, #tpu.memory_space<vmem>>, vector<1x16xf32>
    %3 = arith.truncf %2 : vector<1x16xf32> to vector<1x16xbf16>
    %c0_5 = arith.constant 0 : index
    %c0_6 = arith.constant 0 : index
    %4 = vector.load %arg6[%c0_5, %c0_6] : memref<1x1xf32, #tpu.memory_space<vmem>>, vector<1x1xf32>
    %cst = arith.constant 0.000000e+00 : f32
    %5 = vector.broadcast %cst : f32 to vector<16x12xf32>
    %c0_i32 = arith.constant 0 : i32
    %6 = arith.truncf %5 : vector<16x12xf32> to vector<16x12xbf16>
    %cst_7 = arith.constant dense<0.000000e+00> : vector<48x12xf32>
    %7 = tpu.matmul %0, %6, %cst_7 {dimension_numbers = #tpu.dot_dimension_numbers<[1], [0], [0], [1], [0, 0, 1, 1], [], []>} : vector<48x16xbf16>, vector<16x12xbf16>, vector<48x12xf32> -> vector<48x12xf32>
    %8 = vector.broadcast %1 : vector<48x1xf32> to vector<48x12xf32>
    %9 = arith.addf %7, %8 : vector<48x12xf32>
    %10 = arith.index_cast %c0_i32 : i32 to index
    %c0_8 = arith.constant 0 : index
    %c0_9 = arith.constant 0 : index
    %11 = vector.load %arg1[%10, %c0_8, %c0_9] : memref<2x48x12xbf16, #tpu.memory_space<vmem>>, vector<1x48x12xbf16>
    %12 = vector.shape_cast %11 : vector<1x48x12xbf16> to vector<48x12xbf16>
    %13 = arith.extf %12 : vector<48x12xbf16> to vector<48x12xf32>
    %14 = vector.extract_strided_slice %13 {offsets = [0, 0], sizes = [16, 12], strides = [1, 1]} : vector<48x12xf32> to vector<16x12xf32>
    %15 = vector.extract_strided_slice %9 {offsets = [0, 0], sizes = [16, 12], strides = [1, 1]} : vector<48x12xf32> to vector<16x12xf32>
    %16 = arith.addf %14, %15 : vector<16x12xf32>
    %17 = arith.negf %16 : vector<16x12xf32>
    %18 = math.exp %17 : vector<16x12xf32>
    %cst_10 = arith.constant 1.000000e+00 : f32
    %19 = vector.broadcast %cst_10 : f32 to vector<16x12xf32>
    %20 = arith.addf %19, %18 : vector<16x12xf32>
    %21 = arith.divf %19, %20 : vector<16x12xf32>
    %22 = vector.extract_strided_slice %13 {offsets = [16, 0], sizes = [16, 12], strides = [1, 1]} : vector<48x12xf32> to vector<16x12xf32>
    %23 = vector.extract_strided_slice %9 {offsets = [16, 0], sizes = [16, 12], strides = [1, 1]} : vector<48x12xf32> to vector<16x12xf32>
    %24 = arith.addf %22, %23 : vector<16x12xf32>
    %25 = arith.negf %24 : vector<16x12xf32>
    %26 = math.exp %25 : vector<16x12xf32>
    %cst_11 = arith.constant 1.000000e+00 : f32
    %27 = vector.broadcast %cst_11 : f32 to vector<16x12xf32>
    %28 = arith.addf %27, %26 : vector<16x12xf32>
    %29 = arith.divf %27, %28 : vector<16x12xf32>
    %30 = vector.extract_strided_slice %13 {offsets = [32, 0], sizes = [16, 12], strides = [1, 1]} : vector<48x12xf32> to vector<16x12xf32>
    %31 = vector.extract_strided_slice %9 {offsets = [32, 0], sizes = [16, 12], strides = [1, 1]} : vector<48x12xf32> to vector<16x12xf32>
    %32 = arith.mulf %21, %31 : vector<16x12xf32>
    %33 = arith.addf %30, %32 : vector<16x12xf32>
    %34 = math.tanh %33 : vector<16x12xf32>
    %cst_12 = arith.constant 1.000000e+00 : f32
    %35 = vector.broadcast %cst_12 : f32 to vector<16x12xf32>
    %36 = arith.subf %35, %29 : vector<16x12xf32>
    %37 = arith.mulf %36, %34 : vector<16x12xf32>
    %38 = arith.mulf %29, %5 : vector<16x12xf32>
    %39 = arith.addf %37, %38 : vector<16x12xf32>
    %40 = arith.truncf %39 : vector<16x12xf32> to vector<16x12xbf16>
    %cst_13 = arith.constant dense<0.000000e+00> : vector<1x12xf32>
    %41 = tpu.matmul %3, %40, %cst_13 {dimension_numbers = #tpu.dot_dimension_numbers<[1], [0], [0], [1], [0, 0, 1, 1], [], []>} : vector<1x16xbf16>, vector<16x12xbf16>, vector<1x12xf32> -> vector<1x12xf32>
    %42 = vector.broadcast %4 : vector<1x1xf32> to vector<1x12xf32>
    %43 = arith.addf %41, %42 : vector<1x12xf32>
    %44 = arith.negf %43 : vector<1x12xf32>
    %45 = math.exp %44 : vector<1x12xf32>
    %cst_14 = arith.constant 1.000000e+00 : f32
    %46 = vector.broadcast %cst_14 : f32 to vector<1x12xf32>
    %47 = arith.addf %46, %45 : vector<1x12xf32>
    %48 = arith.divf %46, %47 : vector<1x12xf32>
    %49 = arith.index_cast %c0_i32 : i32 to index
    %c0_15 = arith.constant 0 : index
    %50 = vector.load %arg2[%49, %c0_15] : memref<2x12xf32, #tpu.memory_space<vmem>>, vector<1x12xf32>
    %51 = arith.mulf %48, %50 : vector<1x12xf32>
    %52 = arith.index_cast %c0_i32 : i32 to index
    %c0_16 = arith.constant 0 : index
    %53 = vector.load %arg7[%52, %c0_16] : memref<2x12xf32, #tpu.memory_space<vmem>>, vector<1x12xf32>
    tpu.vector_store %arg7[%52, %c0_16], %51 {strides = array<i32>} : memref<2x12xf32, #tpu.memory_space<vmem>>, vector<1x12xf32>,
    %c1_i32 = arith.constant 1 : i32
    %54 = arith.truncf %39 : vector<16x12xf32> to vector<16x12xbf16>
    %cst_17 = arith.constant dense<0.000000e+00> : vector<48x12xf32>
    %55 = tpu.matmul %0, %54, %cst_17 {dimension_numbers = #tpu.dot_dimension_numbers<[1], [0], [0], [1], [0, 0, 1, 1], [], []>} : vector<48x16xbf16>, vector<16x12xbf16>, vector<48x12xf32> -> vector<48x12xf32>
    %56 = vector.broadcast %1 : vector<48x1xf32> to vector<48x12xf32>
    %57 = arith.addf %55, %56 : vector<48x12xf32>
    %58 = arith.index_cast %c1_i32 : i32 to index
    %c0_18 = arith.constant 0 : index
    %c0_19 = arith.constant 0 : index
    %59 = vector.load %arg1[%58, %c0_18, %c0_19] : memref<2x48x12xbf16, #tpu.memory_space<vmem>>, vector<1x48x12xbf16>
    %60 = vector.shape_cast %59 : vector<1x48x12xbf16> to vector<48x12xbf16>
    %61 = arith.extf %60 : vector<48x12xbf16> to vector<48x12xf32>
    %62 = vector.extract_strided_slice %61 {offsets = [0, 0], sizes = [16, 12], strides = [1, 1]} : vector<48x12xf32> to vector<16x12xf32>
    %63 = vector.extract_strided_slice %57 {offsets = [0, 0], sizes = [16, 12], strides = [1, 1]} : vector<48x12xf32> to vector<16x12xf32>
    %64 = arith.addf %62, %63 : vector<16x12xf32>
    %65 = arith.negf %64 : vector<16x12xf32>
    %66 = math.exp %65 : vector<16x12xf32>
    %cst_20 = arith.constant 1.000000e+00 : f32
    %67 = vector.broadcast %cst_20 : f32 to vector<16x12xf32>
    %68 = arith.addf %67, %66 : vector<16x12xf32>
    %69 = arith.divf %67, %68 : vector<16x12xf32>
    %70 = vector.extract_strided_slice %61 {offsets = [16, 0], sizes = [16, 12], strides = [1, 1]} : vector<48x12xf32> to vector<16x12xf32>
    %71 = vector.extract_strided_slice %57 {offsets = [16, 0], sizes = [16, 12], strides = [1, 1]} : vector<48x12xf32> to vector<16x12xf32>
    %72 = arith.addf %70, %71 : vector<16x12xf32>
    %73 = arith.negf %72 : vector<16x12xf32>
    %74 = math.exp %73 : vector<16x12xf32>
    %cst_21 = arith.constant 1.000000e+00 : f32
    %75 = vector.broadcast %cst_21 : f32 to vector<16x12xf32>
    %76 = arith.addf %75, %74 : vector<16x12xf32>
    %77 = arith.divf %75, %76 : vector<16x12xf32>
    %78 = vector.extract_strided_slice %61 {offsets = [32, 0], sizes = [16, 12], strides = [1, 1]} : vector<48x12xf32> to vector<16x12xf32>
    %79 = vector.extract_strided_slice %57 {offsets = [32, 0], sizes = [16, 12], strides = [1, 1]} : vector<48x12xf32> to vector<16x12xf32>
    %80 = arith.mulf %69, %79 : vector<16x12xf32>
    %81 = arith.addf %78, %80 : vector<16x12xf32>
    %82 = math.tanh %81 : vector<16x12xf32>
    %cst_22 = arith.constant 1.000000e+00 : f32
    %83 = vector.broadcast %cst_22 : f32 to vector<16x12xf32>
    %84 = arith.subf %83, %77 : vector<16x12xf32>
    %85 = arith.mulf %84, %82 : vector<16x12xf32>
    %86 = arith.mulf %77, %39 : vector<16x12xf32>
    %87 = arith.addf %85, %86 : vector<16x12xf32>
    %88 = arith.truncf %87 : vector<16x12xf32> to vector<16x12xbf16>
    %cst_23 = arith.constant dense<0.000000e+00> : vector<1x12xf32>
    %89 = tpu.matmul %3, %88, %cst_23 {dimension_numbers = #tpu.dot_dimension_numbers<[1], [0], [0], [1], [0, 0, 1, 1], [], []>} : vector<1x16xbf16>, vector<16x12xbf16>, vector<1x12xf32> -> vector<1x12xf32>
    %90 = vector.broadcast %4 : vector<1x1xf32> to vector<1x12xf32>
    %91 = arith.addf %89, %90 : vector<1x12xf32>
    %92 = arith.negf %91 : vector<1x12xf32>
    %93 = math.exp %92 : vector<1x12xf32>
    %cst_24 = arith.constant 1.000000e+00 : f32
    %94 = vector.broadcast %cst_24 : f32 to vector<1x12xf32>
    %95 = arith.addf %94, %93 : vector<1x12xf32>
    %96 = arith.divf %94, %95 : vector<1x12xf32>
    %97 = arith.index_cast %c1_i32 : i32 to index
    %c0_25 = arith.constant 0 : index
    %98 = vector.load %arg2[%97, %c0_25] : memref<2x12xf32, #tpu.memory_space<vmem>>, vector<1x12xf32>
    %99 = arith.mulf %96, %98 : vector<1x12xf32>
    %100 = arith.index_cast %c1_i32 : i32 to index
    %c0_26 = arith.constant 0 : index
    %101 = vector.load %arg7[%100, %c0_26] : memref<2x12xf32, #tpu.memory_space<vmem>>, vector<1x12xf32>
    tpu.vector_store %arg7[%100, %c0_26], %99 {strides = array<i32>} : memref<2x12xf32, #tpu.memory_space<vmem>>, vector<1x12xf32>,
    %c2_i32 = arith.constant 2 : i32
    return
  }
  func.func @transform_0(%arg0: i32) -> (i32, i32, i32) {
    %c0_i32 = arith.constant 0 : i32
    %c0_i32_0 = arith.constant 0 : i32
    %c0_i32_1 = arith.constant 0 : i32
    return %c0_i32, %c0_i32_0, %arg0 : i32, i32, i32
  }
  func.func @transform_1(%arg0: i32) -> (i32, i32) {
    %c0_i32 = arith.constant 0 : i32
    %c0_i32_0 = arith.constant 0 : i32
    return %c0_i32, %arg0 : i32, i32
  }
  func.func @transform_2(%arg0: i32) -> (i32, i32) {
    %c0_i32 = arith.constant 0 : i32
    %c0_i32_0 = arith.constant 0 : i32
    %c0_i32_1 = arith.constant 0 : i32
    return %c0_i32, %c0_i32_0 : i32, i32
  }
  func.func @transform_3(%arg0: i32) -> (i32, i32) {
    %c0_i32 = arith.constant 0 : i32
    %c0_i32_0 = arith.constant 0 : i32
    %c0_i32_1 = arith.constant 0 : i32
    return %c0_i32, %c0_i32_0 : i32, i32
  }
  func.func @transform_4(%arg0: i32) -> (i32, i32) {
    %c0_i32 = arith.constant 0 : i32
    %c0_i32_0 = arith.constant 0 : i32
    %c0_i32_1 = arith.constant 0 : i32
    return %c0_i32, %c0_i32_0 : i32, i32
  }
  func.func @transform_5(%arg0: i32) -> (i32, i32) {
    %c0_i32 = arith.constant 0 : i32
    %c0_i32_0 = arith.constant 0 : i32
    %c0_i32_1 = arith.constant 0 : i32
    return %c0_i32, %c0_i32_0 : i32, i32
  }
  func.func @transform_6(%arg0: i32) -> (i32, i32) {
    %c0_i32 = arith.constant 0 : i32
    %c0_i32_0 = arith.constant 0 : i32
    return %c0_i32, %arg0 : i32, i32
  }
}

module attributes {stable_mosaic.version = 11 : i64} {
  func.func @_cls_head_kernel(%arg0: memref<2x32xf32, #tpu.memory_space<vmem>>, %arg1: memref<32x32xbf16, #tpu.memory_space<vmem>>, %arg2: memref<1x32xf32, #tpu.memory_space<vmem>>, %arg3: memref<32x16xbf16, #tpu.memory_space<vmem>>, %arg4: memref<1x16xf32, #tpu.memory_space<vmem>>, %arg5: memref<16x2xf32, #tpu.memory_space<vmem>>, %arg6: memref<1x2xf32, #tpu.memory_space<vmem>>, %arg7: memref<2x2xf32, #tpu.memory_space<vmem>>) attributes {dimension_semantics = [], scalar_prefetch = 0 : i64, scratch_operands = 0 : i64, tpu.core_type = #tpu.core_type<tc>} {
    %c0 = arith.constant 0 : index
    %c0_0 = arith.constant 0 : index
    %0 = vector.load %arg0[%c0, %c0_0] : memref<2x32xf32, #tpu.memory_space<vmem>>, vector<2x32xf32>
    %1 = arith.truncf %0 : vector<2x32xf32> to vector<2x32xbf16>
    %c0_1 = arith.constant 0 : index
    %c0_2 = arith.constant 0 : index
    %2 = vector.load %arg1[%c0_1, %c0_2] : memref<32x32xbf16, #tpu.memory_space<vmem>>, vector<32x32xbf16>
    %cst = arith.constant dense<0.000000e+00> : vector<2x32xf32>
    %3 = tpu.matmul %1, %2, %cst {dimension_numbers = #tpu.dot_dimension_numbers<[1], [0], [0], [1], [0, 0, 1, 1], [], []>} : vector<2x32xbf16>, vector<32x32xbf16>, vector<2x32xf32> -> vector<2x32xf32>
    %c0_3 = arith.constant 0 : index
    %c0_4 = arith.constant 0 : index
    %4 = vector.load %arg2[%c0_3, %c0_4] : memref<1x32xf32, #tpu.memory_space<vmem>>, vector<1x32xf32>
    %5 = vector.broadcast %4 : vector<1x32xf32> to vector<2x32xf32>
    %6 = arith.addf %3, %5 : vector<2x32xf32>
    %7 = math.tanh %6 : vector<2x32xf32>
    %8 = arith.truncf %7 : vector<2x32xf32> to vector<2x32xbf16>
    %c0_5 = arith.constant 0 : index
    %c0_6 = arith.constant 0 : index
    %9 = vector.load %arg3[%c0_5, %c0_6] : memref<32x16xbf16, #tpu.memory_space<vmem>>, vector<32x16xbf16>
    %cst_7 = arith.constant dense<0.000000e+00> : vector<2x16xf32>
    %10 = tpu.matmul %8, %9, %cst_7 {dimension_numbers = #tpu.dot_dimension_numbers<[1], [0], [0], [1], [0, 0, 1, 1], [], []>} : vector<2x32xbf16>, vector<32x16xbf16>, vector<2x16xf32> -> vector<2x16xf32>
    %c0_8 = arith.constant 0 : index
    %c0_9 = arith.constant 0 : index
    %11 = vector.load %arg4[%c0_8, %c0_9] : memref<1x16xf32, #tpu.memory_space<vmem>>, vector<1x16xf32>
    %12 = vector.broadcast %11 : vector<1x16xf32> to vector<2x16xf32>
    %13 = arith.addf %10, %12 : vector<2x16xf32>
    %14 = math.tanh %13 : vector<2x16xf32>
    %c0_10 = arith.constant 0 : index
    %c0_11 = arith.constant 0 : index
    %15 = vector.load %arg5[%c0_10, %c0_11] : memref<16x2xf32, #tpu.memory_space<vmem>>, vector<16x2xf32>
    %cst_12 = arith.constant dense<0.000000e+00> : vector<2x2xf32>
    %16 = tpu.matmul %14, %15, %cst_12 {dimension_numbers = #tpu.dot_dimension_numbers<[1], [0], [0], [1], [0, 0, 1, 1], [], []>} : vector<2x16xf32>, vector<16x2xf32>, vector<2x2xf32> -> vector<2x2xf32>
    %c0_13 = arith.constant 0 : index
    %c0_14 = arith.constant 0 : index
    %17 = vector.load %arg6[%c0_13, %c0_14] : memref<1x2xf32, #tpu.memory_space<vmem>>, vector<1x2xf32>
    %18 = vector.broadcast %17 : vector<1x2xf32> to vector<2x2xf32>
    %19 = arith.addf %16, %18 : vector<2x2xf32>
    %cst_15 = arith.constant dense<0xFF800000> : vector<2xf32>
    %20 = vector.multi_reduction <maximumf>, %19, %cst_15 [1] : vector<2x2xf32> to vector<2xf32>
    %21 = vector.shape_cast %20 : vector<2xf32> to vector<2x1xf32>
    %22 = vector.broadcast %21 : vector<2x1xf32> to vector<2x2xf32>
    %23 = arith.subf %19, %22 : vector<2x2xf32>
    %24 = math.exp %23 : vector<2x2xf32>
    %cst_16 = arith.constant dense<0.000000e+00> : vector<2xf32>
    %25 = vector.multi_reduction <add>, %24, %cst_16 [1] : vector<2x2xf32> to vector<2xf32>
    %26 = vector.shape_cast %25 : vector<2xf32> to vector<2x1xf32>
    %27 = vector.broadcast %26 : vector<2x1xf32> to vector<2x2xf32>
    %28 = arith.divf %24, %27 : vector<2x2xf32>
    %c0_17 = arith.constant 0 : index
    %c0_18 = arith.constant 0 : index
    %29 = vector.load %arg7[%c0_17, %c0_18] : memref<2x2xf32, #tpu.memory_space<vmem>>, vector<2x2xf32>
    tpu.vector_store %arg7[%c0_17, %c0_18], %28 {strides = array<i32>} : memref<2x2xf32, #tpu.memory_space<vmem>>, vector<2x2xf32>,
    return
  }
}

</mosaic_0001>

<llo_original>
// kernel: bert_mtl_forward.3
$region0: #{bert_mtl_forward.3}
  #allocation0 [shape = 'u32[]', space=smem, size = 0x4, offset = 0x4, fixed_abs, tag = 'smem constant byte address 0x4 - core index']
  #allocation1 [shape = 'u32[72,128]{1,0:T(1,128)}', space=vmem, size = 0x9000, scoped, tag = 'internal scratch']
  %s0 = inlined_call_operand.vmem [shape: bf16[2,32,12], index: 0, kind: input, shape index: {}]
  %s1 = inlined_call_operand.vmem [shape: bf16[48,32], index: 1, kind: input, shape index: {}]
  %s2 = inlined_call_operand.vmem [shape: f32[48,1], index: 2, kind: input, shape index: {}]
  %s3 = inlined_call_operand.vmem [shape: bf16[2,48,12], index: 3, kind: output, shape index: {}]
  %s4 = sld [smem:[#allocation0]]
  $region45: #{bert_mtl_forward.3} parent=0
    _
  %s6 = ssub.s32 1, %s4
  %s7 = scalar_select 0, %s6, %s4
  loop: start=0, step=1, limit=4
  $region2: #{bert_mtl_forward.3} parent=0 // loop_pre_header
    _
  $region3: #{bert_mtl_forward.3} parent=0 // loop_header
    %s9 = sphi 0, %s13
    %p10 = scmp.ge.s32.totalorder %s9, 4
    %s19 = sphi 0, %s21
    %s22 = sphi 0, %s19
    %s23 = sphi 0, %s22
    %s39 = sphi 0, %s23
    %s43 = sphi 0, %s43
    %s45 = sphi 0, %s43
    %s46 = sphi 0, %s45
    %s60 = sphi 0, %s46
    %s64 = sphi 0, %s64
    %s66 = sphi 0, %s64
    %s67 = sphi 0, %s66
    %s81 = sphi 0, %s67
    %s87 = sphi 0, %s89
    %s90 = sphi 0, %s87
    %s91 = sphi 0, %s90
    %s107 = sphi 0, %s91
  $region4: #{bert_mtl_forward.3} parent=0 // loop_header_branch
    %12 = sbr.rel (%p10) target = $region8
  $region5: #{bert_mtl_forward.3} parent=0 // loop_body
    %s14 = ssub.s32 %s9, 1
    %s15 = ssub.s32 %s9, 2
    %s16 = sadd.s32 %s9, 1
    %s17 = ssub.s32 %s9, %s16
    %p18 = scmp.eq.s32.totalorder %s17, 0
    %s20 = sadd.s32 %s19, 1
    %s21 = scalar_select %p18, %s19, %s20
    %p24 = pneg %p18
    %p25 = scmp.eq.s32.totalorder %s9, 1
    %p26 = por %p24, %p25
    %p27 = scmp.ne.s32.totalorder %s19, %s22
    %p28 = scmp.eq.s32.totalorder %s9, 0
    %p29 = por %p27, %p28
    %p30 = scmp.ne.s32.totalorder %s19, %s22
    %p31 = scmp.eq.s32.totalorder %s14, 1
    %p32 = por %p30, %p31
    %p33 = scmp.ne.s32.totalorder %s22, %s23
    %p34 = scmp.eq.s32.totalorder %s14, 0
    %p35 = por %p33, %p34
    %p36 = scmp.ne.s32.totalorder %s22, %s23
    %p37 = scmp.eq.s32.totalorder %s15, 1
    %p38 = por %p36, %p37
    %p40 = scmp.ne.s32.totalorder %s23, %s39
    %p41 = scmp.eq.s32.totalorder %s15, 0
    %p42 = por %p40, %p41
    %s44 = sadd.s32 %s43, 1
    %p47 = scmp.eq.s32.totalorder %s9, 1
    %p48 = scmp.ne.s32.totalorder %s43, %s45
    %p49 = scmp.eq.s32.totalorder %s9, 0
    %p50 = por %p48, %p49
    %p51 = scmp.ne.s32.totalorder %s43, %s45
    %p52 = scmp.eq.s32.totalorder %s14, 1
    %p53 = por %p51, %p52
    %p54 = scmp.ne.s32.totalorder %s45, %s46
    %p55 = scmp.eq.s32.totalorder %s14, 0
    %p56 = por %p54, %p55
    %p57 = scmp.ne.s32.totalorder %s45, %s46
    %p58 = scmp.eq.s32.totalorder %s15, 1
    %p59 = por %p57, %p58
    %p61 = scmp.ne.s32.totalorder %s46, %s60
    %p62 = scmp.eq.s32.totalorder %s15, 0
    %p63 = por %p61, %p62
    %s65 = sadd.s32 %s64, 1
    %p68 = scmp.eq.s32.totalorder %s9, 1
    %p69 = scmp.ne.s32.totalorder %s64, %s66
    %p70 = scmp.eq.s32.totalorder %s9, 0
    %p71 = por %p69, %p70
    %p72 = scmp.ne.s32.totalorder %s64, %s66
    %p73 = scmp.eq.s32.totalorder %s14, 1
    %p74 = por %p72, %p73
    %p75 = scmp.ne.s32.totalorder %s66, %s67
    %p76 = scmp.eq.s32.totalorder %s14, 0
    %p77 = por %p75, %p76
    %p78 = scmp.ne.s32.totalorder %s66, %s67
    %p79 = scmp.eq.s32.totalorder %s15, 1
    %p80 = por %p78, %p79
    %p82 = scmp.ne.s32.totalorder %s67, %s81
    %p83 = scmp.eq.s32.totalorder %s15, 0
    %p84 = por %p82, %p83
    %s85 = ssub.s32 %s9, %s16
    %p86 = scmp.eq.s32.totalorder %s85, 0
    %s88 = sadd.s32 %s87, 1
    %s89 = scalar_select %p86, %s87, %s88
    %p92 = pneg %p86
    %p93 = scmp.eq.s32.totalorder %s9, 1
    %p94 = por %p92, %p93
    %p95 = scmp.ne.s32.totalorder %s87, %s90
    %p96 = scmp.eq.s32.totalorder %s9, 0
    %p97 = por %p95, %p96
    %p98 = scmp.ne.s32.totalorder %s87, %s90
    %p99 = scmp.eq.s32.totalorder %s14, 1
    %p100 = por %p98, %p99
    %p101 = scmp.ne.s32.totalorder %s90, %s91
    %p102 = scmp.eq.s32.totalorder %s14, 0
    %p103 = por %p101, %p102
    %p104 = scmp.ne.s32.totalorder %s90, %s91
    %p105 = scmp.eq.s32.totalorder %s15, 1
    %p106 = por %p104, %p105
    %p108 = scmp.ne.s32.totalorder %s91, %s107
    %p109 = scmp.eq.s32.totalorder %s15, 0
    %p110 = por %p108, %p109
    %p111 = scmp.le.s32.totalorder 1, %s9
    %p112 = scmp.lt.s32.totalorder %s9, 3
    %p113 = pnand %p111, %p112
    %p114 = pneg %p113
    // Predicated region
    $region9: #{bert_mtl_forward.3} parent=5 // pred_check
      _
    $region10: #{bert_mtl_forward.3} parent=5 // pred_check_branch
      %116 = sbr.rel (%p113) target = $region12
    $region11: #{bert_mtl_forward.3} parent=5 // pred_region
      %s117 = ssub.s32 %s9, 1
      // Predicated region
      $region13: #{bert_mtl_forward.3} parent=11 // pred_check
        %p118 = pneg %p56
      $region14: #{bert_mtl_forward.3} parent=11 // pred_check_branch
        %120 = sbr.rel (%p118) target = $region16
      $region15: #{bert_mtl_forward.3} parent=11 // pred_region
        _
      $region16: #{bert_mtl_forward.3} parent=11 // pred_fallthru
        _
      // Predicated region
      $region17: #{bert_mtl_forward.3} parent=11 // pred_check
        %p121 = pneg %p77
      $region18: #{bert_mtl_forward.3} parent=11 // pred_check_branch
        %123 = sbr.rel (%p121) target = $region20
      $region19: #{bert_mtl_forward.3} parent=11 // pred_region
        _
      $region20: #{bert_mtl_forward.3} parent=11 // pred_fallthru
        _
    $region12: #{bert_mtl_forward.3} parent=5 // pred_fallthru
      _
    %p124 = scmp.lt.s32.totalorder %s9, 2
    // Predicated region
    $region21: #{bert_mtl_forward.3} parent=5 // pred_check
      %p125 = pneg %p124
    $region22: #{bert_mtl_forward.3} parent=5 // pred_check_branch
      %127 = sbr.rel (%p125) target = $region24
    $region23: #{bert_mtl_forward.3} parent=5 // pred_region
      // Predicated region
      $region25: #{bert_mtl_forward.3} parent=23 // pred_check
        %p128 = pneg %p29
      $region26: #{bert_mtl_forward.3} parent=23 // pred_check_branch
        %130 = sbr.rel (%p128) target = $region28
      $region27: #{bert_mtl_forward.3} parent=23 // pred_region
        %p131 = scmp.lt.s32.totalorder %s9, 1
        %s132 = scalar_select %p131, %s9, 1
        %s133 = smul.addr %s132, 4
        %s134 = smul.addr %s133, 4
        %s135 = scalar_lea.vmem %s0, %s134
      $region28: #{bert_mtl_forward.3} parent=23 // pred_fallthru
        _
    $region24: #{bert_mtl_forward.3} parent=5 // pred_fallthru
      _
    %p136 = scmp.le.s32.totalorder 1, %s9
    %p137 = scmp.lt.s32.totalorder %s9, 3
    %p138 = pnand %p136, %p137
    %p139 = pneg %p138
    // Predicated region
    $region29: #{bert_mtl_forward.3} parent=5 // pred_check
      _
    $region30: #{bert_mtl_forward.3} parent=5 // pred_check_branch
      %141 = sbr.rel (%p138) target = $region32
    $region31: #{bert_mtl_forward.3} parent=5 // pred_region
      %s142 = ssub.s32 %s9, 1
      %p143 = scmp.lt.s32.totalorder %s14, 1
      %s144 = scalar_select %p143, %s14, 1
      %s145 = smul.addr %s144, 4
      %s146 = smul.addr %s145, 4
      %s147 = scalar_lea.vmem %s0, %s146
      %p148 = pneg %p35
      %p149 = pneg %p32
      %p150 = pneg %p56
      %p151 = pneg %p53
      %p152 = pneg %p77
      %p153 = pneg %p74
      %p154 = pneg %p103
      %p155 = pneg %p100
      %p156 = scmp.lt.s32.totalorder %s14, 1
      %s157 = scalar_select %p156, %s14, 1
      %s158 = smul.addr %s157, 6
      %s159 = smul.addr %s158, 4
      %s160 = scalar_lea.vmem %s3, %s159
      %p161 = scmp.lt.s32.totalorder %s14, 1
      %s162 = scalar_select %p161, %s14, 1
      %s163 = smul.addr %s162, 4
      %s164 = smul.addr %s163, 4
      %s165 = scalar_lea.vmem %s0, %s164
      %p166 = scmp.lt.s32.totalorder %s14, 1
      %s167 = scalar_select %p166, %s14, 1
      %s168 = smul.addr %s167, 6
      %s169 = smul.addr %s168, 4
      %s170 = scalar_lea.vmem %s3, %s169
      %v172 = vld [vmem:[%s1] sm:$0xf]
      %v173 = vld [vmem:[%s1 + $0x4] sm:$0xf]
      %v174 = vld [vmem:[%s1 + $0x8] sm:$0xf]
      %v175 = vld [vmem:[%s1 + $0xc] sm:$0xf]
      %v176 = vld [vmem:[%s1 + $0x10] sm:$0xf]
      %v177 = vld [vmem:[%s1 + $0x14] sm:$0xf]
      %v178 = vld [vmem:[%s165] sm:$0xf]
      %v179 = vld [vmem:[%s165 + $0x4] sm:$0xf]
      %v180 = vld [vmem:[%s165 + $0x8] sm:$0xf]
      %v181 = vld [vmem:[%s165 + $0xc] sm:$0xf]
      %v182 = vld [vmem:[%s2] sm:$0xff]
      %v183 = vld [vmem:[%s2 + $0x8] sm:$0xff]
      %v184 = vld [vmem:[%s2 + $0x10] sm:$0xff]
      %v185 = vld [vmem:[%s2 + $0x18] sm:$0xff]
      %v186 = vld [vmem:[%s2 + $0x20] sm:$0xff]
      %v187 = vld [vmem:[%s2 + $0x28] sm:$0xff]
      %189 = vset.pattern.permute.xlu0 0
      %190 = vperm.xlu0 %189, %v182
      %v191 = vpop.permute.xlu0 %190
      %194 = vset.pattern.permute.xlu0 0
      %195 = vperm.xlu0 %194, %v183
      %v196 = vpop.permute.xlu0 %195
      %199 = vset.pattern.permute.xlu0 0
      %200 = vperm.xlu0 %199, %v184
      %v201 = vpop.permute.xlu0 %200
      %204 = vset.pattern.permute.xlu0 0
      %205 = vperm.xlu0 %204, %v185
      %v206 = vpop.permute.xlu0 %205
      %209 = vset.pattern.permute.xlu0 0
      %210 = vperm.xlu0 %209, %v186
      %v211 = vpop.permute.xlu0 %210
      %214 = vset.pattern.permute.xlu0 0
      %215 = vperm.xlu0 %214, %v187
      %v216 = vpop.permute.xlu0 %215
      %v224 = vunpack.c.l.b16 %v172
      %v225 = vunpack.c.l.b16 %v173
      %v226 = vunpack.c.l.b16 %v174
      %v227 = vunpack.c.l.b16 %v175
      %v228 = vunpack.c.l.b16 %v176
      %v229 = vunpack.c.l.b16 %v177
      %v230 = vpack.c.b16 %v225, %v224
      %v231 = vpack.c.b16 %v227, %v226
      %v232 = vpack.c.b16 %v229, %v228
      %v237 = vunpack.c.l.b16 %v178
      %v238 = vunpack.c.l.b16 %v179
      %v239 = vunpack.c.l.b16 %v180
      %v240 = vunpack.c.l.b16 %v181
      %v241 = vpack.c.b16 %v238, %v237
      %v242 = vpack.c.b16 %v240, %v239
      %vm245 = vcmask 261120
      %v247 = vsel %vm245, %v230, 0
      %v250 = vsel %vm245, %v231, 0
      %v253 = vsel %vm245, %v232, 0
      %255 = vmatpush.bf16.msra.mxu0 0
      %256 = vmatpush.bf16.msra.mxu0 0
      %257 = vmatpush.bf16.msra.mxu0 0
      %258 = vmatpush.bf16.msra.mxu0 0
      %259 = vmatpush.bf16.msra.mxu0 0
      %260 = vmatpush.bf16.msra.mxu0 0
      %261 = vmatpush.bf16.msra.mxu0 %v242
      %262 = vmatpush.bf16.msra.mxu0 %v241
      %263 = vmatmul.bf16.gmra.mxu0 %v247
      %v264 = vpop.f32.mrf.mxu0
      %v265 = vadd.f32 %v191, %v264
      %v266 = vpop.f32.mrf.mxu0
      %v267 = vadd.f32 %v196, %v266
      %268 = vmatmul.bf16.gmra.mxu0 %v250
      %v269 = vpop.f32.mrf.mxu0
      %v270 = vadd.f32 %v201, %v269
      %v271 = vpop.f32.mrf.mxu0
      %v272 = vadd.f32 %v206, %v271
      %273 = vmatmul.bf16.gmra.mxu0 %v253
      %v274 = vpop.f32.mrf.mxu0
      %v275 = vadd.f32 %v211, %v274
      %v276 = vpop.f32.mrf.mxu0
      %v277 = vadd.f32 %v216, %v276
      %278 = vdwg.mxu0
      %v279 = vpack.c.bf16 %v265, %v265
      %v280 = vpack.c.bf16 %v267, %v267
      %v281 = vpack.c.bf16 %v270, %v270
      %v282 = vpack.c.bf16 %v272, %v272
      %v283 = vpack.c.bf16 %v275, %v275
      %v284 = vpack.c.bf16 %v277, %v277
      %vm285 = vcmask 93184
      %286 = vst.msk [vmem:[%s170] sm:$0xf] %vm285, %v279
      %287 = vst.msk [vmem:[%s170 + $0x4] sm:$0xf] %vm285, %v280
      %288 = vst.msk [vmem:[%s170 + $0x8] sm:$0xf] %vm285, %v281
      %289 = vst.msk [vmem:[%s170 + $0xc] sm:$0xf] %vm285, %v282
      %290 = vst.msk [vmem:[%s170 + $0x10] sm:$0xf] %vm285, %v283
      %291 = vst.msk [vmem:[%s170 + $0x14] sm:$0xf] %vm285, %v284
      %p292 = scmp.lt.s32.totalorder %s14, 1
      %s293 = scalar_select %p292, %s14, 1
      %s294 = smul.addr %s293, 6
      %s295 = smul.addr %s294, 4
      %s296 = scalar_lea.vmem %s3, %s295
      // Predicated region
      $region33: #{bert_mtl_forward.3} parent=31 // pred_check
        %p297 = pneg %p100
      $region34: #{bert_mtl_forward.3} parent=31 // pred_check_branch
        %299 = sbr.rel (%p297) target = $region36
      $region35: #{bert_mtl_forward.3} parent=31 // pred_region
        _
      $region36: #{bert_mtl_forward.3} parent=31 // pred_fallthru
        _
    $region32: #{bert_mtl_forward.3} parent=5 // pred_fallthru
      _
    %p300 = scmp.le.s32.totalorder 2, %s9
    // Predicated region
    $region37: #{bert_mtl_forward.3} parent=5 // pred_check
      %p301 = pneg %p300
    $region38: #{bert_mtl_forward.3} parent=5 // pred_check_branch
      %303 = sbr.rel (%p301) target = $region40
    $region39: #{bert_mtl_forward.3} parent=5 // pred_region
      %s304 = ssub.s32 %s9, 2
      // Predicated region
      $region41: #{bert_mtl_forward.3} parent=39 // pred_check
        %p305 = pneg %p106
      $region42: #{bert_mtl_forward.3} parent=39 // pred_check_branch
        %307 = sbr.rel (%p305) target = $region44
      $region43: #{bert_mtl_forward.3} parent=39 // pred_region
        %p308 = scmp.lt.s32.totalorder %s15, 1
        %s309 = scalar_select %p308, %s15, 1
        %s310 = smul.addr %s309, 6
        %s311 = smul.addr %s310, 4
        %s312 = scalar_lea.vmem %s3, %s311
      $region44: #{bert_mtl_forward.3} parent=39 // pred_fallthru
        _
    $region40: #{bert_mtl_forward.3} parent=5 // pred_fallthru
      _
  $region6: #{bert_mtl_forward.3} parent=0 // loop_footer
    %s13 = sadd.s32 1, %s9
  $region7: #{bert_mtl_forward.3} parent=0 // loop_footer_branch
    %8 = sbr.rel target = $region3
  $region8: #{bert_mtl_forward.3} parent=0 // loop_exit
    _

// kernel: bert_mtl_forward.5
$region0: #{bert_mtl_forward.5}
  #allocation0 [shape = 'u32[]', space=smem, size = 0x4, offset = 0x4, fixed_abs, tag = 'smem constant byte address 0x4 - core index']
  #allocation1 [shape = 'u32[72,128]{1,0:T(1,128)}', space=vmem, size = 0x9000, scoped, tag = 'internal scratch']
  %s0 = inlined_call_operand.vmem [shape: f32[2,32], index: 0, kind: input, shape index: {}]
  %s1 = inlined_call_operand.vmem [shape: bf16[32,32], index: 1, kind: input, shape index: {}]
  %s2 = inlined_call_operand.vmem [shape: f32[1,32], index: 2, kind: input, shape index: {}]
  %s3 = inlined_call_operand.vmem [shape: bf16[32,16], index: 3, kind: input, shape index: {}]
  %s4 = inlined_call_operand.vmem [shape: f32[1,16], index: 4, kind: input, shape index: {}]
  %s5 = inlined_call_operand.vmem [shape: f32[16,2], index: 5, kind: input, shape index: {}]
  %s6 = inlined_call_operand.vmem [shape: f32[1,2], index: 6, kind: input, shape index: {}]
  %s7 = inlined_call_operand.hbm [shape: f32[2,2], index: 7, kind: output, shape index: {}]
  %s8 = sld [smem:[#allocation0]]
  $region38: #{bert_mtl_forward.5} parent=0
    _
  %s10 = ssub.s32 1, %s8
  %s11 = scalar_select 0, %s10, %s8
  $region1: #{bert_mtl_forward.5} parent=0
    #allocation2 [shape = 'u8[1024]{0}', space=vmem, size = 0x400, scoped, tag = 'output window, operand 0, single buffered']
    #allocation3 [shape = 's32[1]{0}', space=sflag, size = 0x4, scoped, tag = 'scoped memory for bert_mtl_forward.5']
    %12 = vsyncpa [#allocation3], 0
    // Predicated region
    $region2: #{bert_mtl_forward.5} parent=1 // pred_check
      _
    $region3: #{bert_mtl_forward.5} parent=1 // pred_check_branch
      %14 = sbr.rel (0) target = $region5
    $region4: #{bert_mtl_forward.5} parent=1 // pred_region
      _
    $region5: #{bert_mtl_forward.5} parent=1 // pred_fallthru
      _
    // Predicated region
    $region6: #{bert_mtl_forward.5} parent=1 // pred_check
      _
    $region7: #{bert_mtl_forward.5} parent=1 // pred_check_branch
      %16 = sbr.rel (0) target = $region9
    $region8: #{bert_mtl_forward.5} parent=1 // pred_region
      _
    $region9: #{bert_mtl_forward.5} parent=1 // pred_fallthru
      _
    // Predicated region
    $region10: #{bert_mtl_forward.5} parent=1 // pred_check
      _
    $region11: #{bert_mtl_forward.5} parent=1 // pred_check_branch
      %18 = sbr.rel (0) target = $region13
    $region12: #{bert_mtl_forward.5} parent=1 // pred_region
      _
    $region13: #{bert_mtl_forward.5} parent=1 // pred_fallthru
      _
    // Predicated region
    $region14: #{bert_mtl_forward.5} parent=1 // pred_check
      _
    $region15: #{bert_mtl_forward.5} parent=1 // pred_check_branch
      %20 = sbr.rel (0) target = $region17
    $region16: #{bert_mtl_forward.5} parent=1 // pred_region
      _
    $region17: #{bert_mtl_forward.5} parent=1 // pred_fallthru
      _
    // Predicated region
    $region18: #{bert_mtl_forward.5} parent=1 // pred_check
      _
    $region19: #{bert_mtl_forward.5} parent=1 // pred_check_branch
      %22 = sbr.rel (0) target = $region21
    $region20: #{bert_mtl_forward.5} parent=1 // pred_region
      _
    $region21: #{bert_mtl_forward.5} parent=1 // pred_fallthru
      _
    // Predicated region
    $region22: #{bert_mtl_forward.5} parent=1 // pred_check
      _
    $region23: #{bert_mtl_forward.5} parent=1 // pred_check_branch
      %24 = sbr.rel (0) target = $region25
    $region24: #{bert_mtl_forward.5} parent=1 // pred_region
      _
    $region25: #{bert_mtl_forward.5} parent=1 // pred_fallthru
      _
    // Predicated region
    $region26: #{bert_mtl_forward.5} parent=1 // pred_check
      _
    $region27: #{bert_mtl_forward.5} parent=1 // pred_check_branch
      %26 = sbr.rel (0) target = $region29
    $region28: #{bert_mtl_forward.5} parent=1 // pred_region
      _
    $region29: #{bert_mtl_forward.5} parent=1 // pred_fallthru
      _
    %v28 = vld [vmem:[%s0] sm:$0x3]
    %v29 = vpack.c.bf16 %v28, %v28
    %v30 = vld [vmem:[%s1] sm:$0xf]
    %v31 = vld [vmem:[%s1 + $0x4] sm:$0xf]
    %v32 = vld [vmem:[%s1 + $0x8] sm:$0xf]
    %v33 = vld [vmem:[%s1 + $0xc] sm:$0xf]
    %v34 = vld [vmem:[%s2] sm:$0x1]
    %v36 = vperm.slane %v34, 0
    %v42 = vunpack.c.l.b16 %v30
    %v43 = vunpack.c.l.b16 %v31
    %v44 = vunpack.c.l.b16 %v32
    %v45 = vunpack.c.l.b16 %v33
    %v46 = vpack.c.b16 %v43, %v42
    %v47 = vpack.c.b16 %v45, %v44
    %vm50 = vcmask 261120
    %v52 = vsel %vm50, %v29, 0
    %54 = vmatpush.bf16.msra.mxu0 0
    %55 = vmatpush.bf16.msra.mxu0 0
    %56 = vmatpush.bf16.msra.mxu0 0
    %57 = vmatpush.bf16.msra.mxu0 0
    %58 = vmatpush.bf16.msra.mxu0 0
    %59 = vmatpush.bf16.msra.mxu0 0
    %60 = vmatpush.bf16.msra.mxu0 %v47
    %61 = vmatpush.bf16.msra.mxu0 %v46
    %62 = vmatmul.bf16.gmra.mxu0 %v52
    %v63 = vpop.f32.mrf.mxu0
    %v64 = vadd.f32 %v36, %v63
    %v65 = vpop.f32.mrf.mxu0
    %66 = vdwg.mxu0
    %v67 = vtanh.pop %v64
    %v68 = vpack.c.bf16 %v67, %v67
    %v69 = vld [vmem:[%s3] sm:$0xf]
    %v70 = vld [vmem:[%s3 + $0x4] sm:$0xf]
    %v71 = vld [vmem:[%s3 + $0x8] sm:$0xf]
    %v72 = vld [vmem:[%s3 + $0xc] sm:$0xf]
    %v73 = vld [vmem:[%s4] sm:$0x1]
    %v75 = vperm.slane %v73, 0
    %v81 = vunpack.c.l.b16 %v69
    %v82 = vunpack.c.l.b16 %v70
    %v83 = vunpack.c.l.b16 %v71
    %v84 = vunpack.c.l.b16 %v72
    %v85 = vpack.c.b16 %v82, %v81
    %v86 = vpack.c.b16 %v84, %v83
    %v90 = vsel %vm50, %v68, 0
    %92 = vmatpush.bf16.msra.mxu0 0
    %93 = vmatpush.bf16.msra.mxu0 0
    %94 = vmatpush.bf16.msra.mxu0 0
    %95 = vmatpush.bf16.msra.mxu0 0
    %96 = vmatpush.bf16.msra.mxu0 0
    %97 = vmatpush.bf16.msra.mxu0 0
    %98 = vmatpush.bf16.msra.mxu0 %v86
    %99 = vmatpush.bf16.msra.mxu0 %v85
    %100 = vmatmul.bf16.gmra.mxu0 %v90
    %v101 = vpop.f32.mrf.mxu0
    %v102 = vadd.f32 %v75, %v101
    %v103 = vpop.f32.mrf.mxu0
    %104 = vdwg.mxu0
    %v105 = vtanh.pop %v102
    %v106 = vld [vmem:[%s5] sm:$0xff]
    %v107 = vld [vmem:[%s5 + $0x8] sm:$0xff]
    %v108 = vld [vmem:[%s6] sm:$0x1]
    %v110 = vperm.slane %v108, 0
    %vm112 = vcmask 130048
    %v114 = vsel %vm112, %v105, 0
    %116 = vmatpush.msra.mxu0 0.0
    %117 = vmatpush.msra.mxu0 0.0
    %118 = vmatpush.msra.mxu0 0.0
    %119 = vmatpush.msra.mxu0 0.0
    %120 = vmatpush.msra.mxu0 0.0
    %121 = vmatpush.msra.mxu0 0.0
    %122 = vmatpush.msra.mxu0 0.0
    %123 = vmatpush.msra.mxu0 0.0
    %124 = vmatpush.msra.mxu0 0.0
    %125 = vmatpush.msra.mxu0 0.0
    %126 = vmatpush.msra.mxu0 0.0
    %127 = vmatpush.msra.mxu0 0.0
    %128 = vmatpush.msra.mxu0 0.0
    %129 = vmatpush.msra.mxu0 0.0
    %130 = vmatpush.msra.mxu0 %v107
    %131 = vmatpush.msra.mxu0 %v106
    %132 = vmatmul.f32.gmra.mxu0 %v114
    %v133 = vpop.f32.mrf.mxu0
    %v134 = vadd.f32 %v110, %v133
    %135 = vdwg.mxu0
    %vm136 = vcmask 9216
    %v137 = vsel %vm136, %v134, -inf
    %138 = vmax.xlane.f32.xlu0 %v137
    %v139 = vpop.xlane.xlu0 %138
    %v140 = vsub.f32 %v134, %v139
    %v141 = vmul.f32 %v140, 1.442695
    %v142 = vpow.pop %v141
    %v143 = vsel %vm136, %v142, 0.0
    %144 = vadd.xlane.f32.xlu0 %v143
    %v145 = vpop.xlane.xlu0 %144
    %v146 = vrcp.pop %v145
    %v147 = vmul.f32 %v145, %v146
    %v148 = vsub.f32 1.0, %v147
    %v149 = vmul.f32 %v146, %v148
    %v150 = vadd.f32 %v146, %v149
    %vm151 = vweird.f32 %v145
    %vm152 = vweird.f32 %v146
    %vm153 = vmor %vm151, %vm152
    %v154 = vsel %vm153, %v146, %v150
    %v155 = vand.u32 2147483647, %v145
    %vm156 = vcmp.eq.f32.partialorder %v155, 8.507059e+37
    %v157 = vand.u32 %v145, 2147483648
    %v158 = vor.u32 1.1754944e-38, %v157
    %v159 = vsel %vm156, %v158, %v154
    %v160 = vmul.f32 %v142, %v159
    %161 = vst.msk [vmem:[#allocation2] sm:$0x3] %vm136, %v160
    // Predicated region
    $region30: #{bert_mtl_forward.5} parent=1 // pred_check
      _
    $region31: #{bert_mtl_forward.5} parent=1 // pred_check_branch
      %163 = sbr.rel (0) target = $region33
    $region32: #{bert_mtl_forward.5} parent=1 // pred_region
      %165 = vsyncadd [#allocation3], 0
      %s167 = sshll.u32 [#allocation2], 4
      %s168 = int_to_ptr.vmem [resolvable:$true] %s167
      %s169 = sshll.u32 %s7, 4
      %s170 = int_to_ptr.hbm [resolvable:$true] %s169
      %172 = dma.vmem_to_hbm [thread:$0]  %s168, 32, %s170, [#allocation3]
    $region33: #{bert_mtl_forward.5} parent=1 // pred_fallthru
      _
    // Predicated region
    $region34: #{bert_mtl_forward.5} parent=1 // pred_check
      _
    $region35: #{bert_mtl_forward.5} parent=1 // pred_check_branch
      %174 = sbr.rel (0) target = $region37
    $region36: #{bert_mtl_forward.5} parent=1 // pred_region
      %176 = dma.done [#allocation3], 32
    $region37: #{bert_mtl_forward.5} parent=1 // pred_fallthru
      _
    %177 = vsyncpa [#allocation3], 1

// kernel: bert_mtl_forward.4
$region0: #{bert_mtl_forward.4}
  #allocation0 [shape = 'u32[]', space=smem, size = 0x4, offset = 0x4, fixed_abs, tag = 'smem constant byte address 0x4 - core index']
  #allocation1 [shape = 'u32[72,128]{1,0:T(1,128)}', space=vmem, size = 0x9000, scoped, tag = 'internal scratch']
  #allocation2 [shape = 'f32[1,1]{1,0:T(1,128)S(1)}', space=vmem, size = 0x200, scoped, tag = 'scoped memory for bert_mtl_forward.4']
  %s0 = inlined_call_operand.vmem [shape: bf16[2,48,12], index: 0, kind: input, shape index: {}]
  %s1 = inlined_call_operand.vmem [shape: f32[2,12], index: 1, kind: input, shape index: {}]
  %s2 = inlined_call_operand.vmem [shape: bf16[48,16], index: 2, kind: input, shape index: {}]
  %s3 = inlined_call_operand.vmem [shape: f32[48,1], index: 3, kind: input, shape index: {}]
  %s4 = inlined_call_operand.vmem [shape: f32[1,16], index: 4, kind: input, shape index: {}]
  %s5 = inlined_call_operand.<no memory space> [shape: f32[1,1], index: 5, kind: input, shape index: {}]
  %s6 = inlined_call_operand.hbm [shape: f32[2,12], index: 6, kind: output, shape index: {}]
  %s7 = sld [smem:[#allocation0]]
  $region34: #{bert_mtl_forward.4} parent=0
    _
  %s9 = ssub.s32 1, %s7
  %s10 = scalar_select 0, %s9, %s7
  %v11 = vstv %s5
  %12 = vst [vmem:[#allocation2] sm:$0x1] %v11
  $region1: #{bert_mtl_forward.4} parent=0
    #allocation3 [shape = 'u8[1024]{0}', space=vmem, size = 0x400, scoped, tag = 'output window, operand 0, single buffered']
    #allocation4 [shape = 's32[1]{0}', space=sflag, size = 0x4, scoped, tag = 'scoped memory for bert_mtl_forward.4']
    %13 = vsyncpa [#allocation4], 0
    // Predicated region
    $region2: #{bert_mtl_forward.4} parent=1 // pred_check
      _
    $region3: #{bert_mtl_forward.4} parent=1 // pred_check_branch
      %15 = sbr.rel (0) target = $region5
    $region4: #{bert_mtl_forward.4} parent=1 // pred_region
      _
    $region5: #{bert_mtl_forward.4} parent=1 // pred_fallthru
      _
    // Predicated region
    $region6: #{bert_mtl_forward.4} parent=1 // pred_check
      _
    $region7: #{bert_mtl_forward.4} parent=1 // pred_check_branch
      %17 = sbr.rel (0) target = $region9
    $region8: #{bert_mtl_forward.4} parent=1 // pred_region
      _
    $region9: #{bert_mtl_forward.4} parent=1 // pred_fallthru
      _
    // Predicated region
    $region10: #{bert_mtl_forward.4} parent=1 // pred_check
      _
    $region11: #{bert_mtl_forward.4} parent=1 // pred_check_branch
      %19 = sbr.rel (0) target = $region13
    $region12: #{bert_mtl_forward.4} parent=1 // pred_region
      _
    $region13: #{bert_mtl_forward.4} parent=1 // pred_fallthru
      _
    // Predicated region
    $region14: #{bert_mtl_forward.4} parent=1 // pred_check
      _
    $region15: #{bert_mtl_forward.4} parent=1 // pred_check_branch
      %21 = sbr.rel (0) target = $region17
    $region16: #{bert_mtl_forward.4} parent=1 // pred_region
      _
    $region17: #{bert_mtl_forward.4} parent=1 // pred_fallthru
      _
    // Predicated region
    $region18: #{bert_mtl_forward.4} parent=1 // pred_check
      _
    $region19: #{bert_mtl_forward.4} parent=1 // pred_check_branch
      %23 = sbr.rel (0) target = $region21
    $region20: #{bert_mtl_forward.4} parent=1 // pred_region
      _
    $region21: #{bert_mtl_forward.4} parent=1 // pred_fallthru
      _
    // Predicated region
    $region22: #{bert_mtl_forward.4} parent=1 // pred_check
      _
    $region23: #{bert_mtl_forward.4} parent=1 // pred_check_branch
      %25 = sbr.rel (0) target = $region25
    $region24: #{bert_mtl_forward.4} parent=1 // pred_region
      _
    $region25: #{bert_mtl_forward.4} parent=1 // pred_fallthru
      _
    %v27 = vld [vmem:[%s2] sm:$0xf]
    %v28 = vld [vmem:[%s2 + $0x4] sm:$0xf]
    %v29 = vld [vmem:[%s2 + $0x8] sm:$0xf]
    %v30 = vld [vmem:[%s2 + $0xc] sm:$0xf]
    %v31 = vld [vmem:[%s2 + $0x10] sm:$0xf]
    %v32 = vld [vmem:[%s2 + $0x14] sm:$0xf]
    %v33 = vld [vmem:[%s3] sm:$0xff]
    %v34 = vld [vmem:[%s3 + $0x8] sm:$0xff]
    %v35 = vld [vmem:[%s3 + $0x10] sm:$0xff]
    %v36 = vld [vmem:[%s3 + $0x18] sm:$0xff]
    %v37 = vld [vmem:[%s3 + $0x20] sm:$0xff]
    %v38 = vld [vmem:[%s3 + $0x28] sm:$0xff]
    %v39 = vld [vmem:[%s4] sm:$0x1]
    %v40 = vpack.c.bf16 %v39, %v39
    %v41 = vld [vmem:[#allocation2] sm:$0x1]
    %43 = vset.pattern.permute.xlu0 0
    %44 = vperm.xlu0 %43, %v33
    %v45 = vpop.permute.xlu0 %44
    %48 = vset.pattern.permute.xlu0 0
    %49 = vperm.xlu0 %48, %v34
    %v50 = vpop.permute.xlu0 %49
    %53 = vset.pattern.permute.xlu0 0
    %54 = vperm.xlu0 %53, %v35
    %v55 = vpop.permute.xlu0 %54
    %58 = vset.pattern.permute.xlu0 0
    %59 = vperm.xlu0 %58, %v36
    %v60 = vpop.permute.xlu0 %59
    %63 = vset.pattern.permute.xlu0 0
    %64 = vperm.xlu0 %63, %v37
    %v65 = vpop.permute.xlu0 %64
    %68 = vset.pattern.permute.xlu0 0
    %69 = vperm.xlu0 %68, %v38
    %v70 = vpop.permute.xlu0 %69
    %v78 = vunpack.c.l.b16 %v27
    %v79 = vunpack.c.l.b16 %v28
    %v80 = vunpack.c.l.b16 %v29
    %v81 = vunpack.c.l.b16 %v30
    %v82 = vunpack.c.l.b16 %v31
    %v83 = vunpack.c.l.b16 %v32
    %v84 = vpack.c.b16 %v79, %v78
    %v85 = vpack.c.b16 %v81, %v80
    %v86 = vpack.c.b16 %v83, %v82
    %vm87 = vcmask 130048
    %v89 = vsel %vm87, %v84, 0
    %v92 = vsel %vm87, %v85, 0
    %v95 = vsel %vm87, %v86, 0
    %97 = vmatpush.bf16.msra.mxu0 0
    %98 = vmatpush.bf16.msra.mxu0 0
    %99 = vmatpush.bf16.msra.mxu0 0
    %100 = vmatpush.bf16.msra.mxu0 0
    %101 = vmatpush.bf16.msra.mxu0 0
    %102 = vmatpush.bf16.msra.mxu0 0
    %103 = vmatpush.bf16.msra.mxu0 0
    %104 = vmatpush.bf16.msra.mxu0 0
    %105 = vmatmul.bf16.gmra.mxu0 %v89
    %v106 = vpop.f32.mrf.mxu0
    %v107 = vadd.f32 %v45, %v106
    %v108 = vpop.f32.mrf.mxu0
    %v109 = vadd.f32 %v50, %v108
    %110 = vmatmul.bf16.gmra.mxu0 %v92
    %v111 = vpop.f32.mrf.mxu0
    %v112 = vadd.f32 %v55, %v111
    %v113 = vpop.f32.mrf.mxu0
    %v114 = vadd.f32 %v60, %v113
    %115 = vmatmul.bf16.gmra.mxu0 %v95
    %v116 = vpop.f32.mrf.mxu0
    %v117 = vadd.f32 %v65, %v116
    %v118 = vpop.f32.mrf.mxu0
    %v119 = vadd.f32 %v70, %v118
    %120 = vdwg.mxu0
    %v121 = vld [vmem:[%s0] sm:$0xf]
    %v122 = vld [vmem:[%s0 + $0x4] sm:$0xf]
    %v123 = vld [vmem:[%s0 + $0x8] sm:$0xf]
    %v124 = vld [vmem:[%s0 + $0xc] sm:$0xf]
    %v125 = vld [vmem:[%s0 + $0x10] sm:$0xf]
    %v126 = vld [vmem:[%s0 + $0x14] sm:$0xf]
    %v127 = vunpack.c.l.bf16 %v121
    %v128 = vunpack.c.l.bf16 %v122
    %v129 = vunpack.c.l.bf16 %v123
    %v130 = vunpack.c.l.bf16 %v124
    %v131 = vunpack.c.l.bf16 %v125
    %v132 = vunpack.c.l.bf16 %v126
    %v133 = vadd.f32 %v127, %v107
    %v134 = vadd.f32 %v128, %v109
    %v135 = vxor.u32 %v133, 2147483648
    %v136 = vxor.u32 %v134, 2147483648
    %v137 = vmul.f32 %v135, 1.442695
    %v138 = vpow.pop %v137
    %v139 = vmul.f32 %v136, 1.442695
    %v140 = vpow.pop %v139
    %v141 = vadd.f32 %v138, 1.0
    %v142 = vadd.f32 %v140, 1.0
    %v143 = vrcp.pop %v141
    %v144 = vmul.f32 %v141, %v143
    %v145 = vsub.f32 1.0, %v144
    %v146 = vmul.f32 %v143, %v145
    %v147 = vadd.f32 %v143, %v146
    %vm148 = vweird.f32 %v141
    %vm149 = vweird.f32 %v143
    %vm150 = vmor %vm148, %vm149
    %v151 = vsel %vm150, %v143, %v147
    %v152 = vand.u32 2147483647, %v141
    %vm153 = vcmp.eq.f32.partialorder %v152, 8.507059e+37
    %v154 = vand.u32 %v141, 2147483648
    %v155 = vor.u32 1.1754944e-38, %v154
    %v156 = vsel %vm153, %v155, %v151
    %v157 = vmul.f32 1.0, %v156
    %v158 = vrcp.pop %v142
    %v159 = vmul.f32 %v142, %v158
    %v160 = vsub.f32 1.0, %v159
    %v161 = vmul.f32 %v158, %v160
    %v162 = vadd.f32 %v158, %v161
    %vm163 = vweird.f32 %v142
    %vm164 = vweird.f32 %v158
    %vm165 = vmor %vm163, %vm164
    %v166 = vsel %vm165, %v158, %v162
    %v167 = vand.u32 2147483647, %v142
    %vm168 = vcmp.eq.f32.partialorder %v167, 8.507059e+37
    %v169 = vand.u32 %v142, 2147483648
    %v170 = vor.u32 1.1754944e-38, %v169
    %v171 = vsel %vm168, %v170, %v166
    %v172 = vmul.f32 1.0, %v171
    %v173 = vadd.f32 %v129, %v112
    %v174 = vadd.f32 %v130, %v114
    %v175 = vxor.u32 %v173, 2147483648
    %v176 = vxor.u32 %v174, 2147483648
    %v177 = vmul.f32 %v175, 1.442695
    %v178 = vpow.pop %v177
    %v179 = vmul.f32 %v176, 1.442695
    %v180 = vpow.pop %v179
    %v181 = vadd.f32 %v178, 1.0
    %v182 = vadd.f32 %v180, 1.0
    %v183 = vrcp.pop %v181
    %v184 = vmul.f32 %v181, %v183
    %v185 = vsub.f32 1.0, %v184
    %v186 = vmul.f32 %v183, %v185
    %v187 = vadd.f32 %v183, %v186
    %vm188 = vweird.f32 %v181
    %vm189 = vweird.f32 %v183
    %vm190 = vmor %vm188, %vm189
    %v191 = vsel %vm190, %v183, %v187
    %v192 = vand.u32 2147483647, %v181
    %vm193 = vcmp.eq.f32.partialorder %v192, 8.507059e+37
    %v194 = vand.u32 %v181, 2147483648
    %v195 = vor.u32 1.1754944e-38, %v194
    %v196 = vsel %vm193, %v195, %v191
    %v197 = vmul.f32 1.0, %v196
    %v198 = vrcp.pop %v182
    %v199 = vmul.f32 %v182, %v198
    %v200 = vsub.f32 1.0, %v199
    %v201 = vmul.f32 %v198, %v200
    %v202 = vadd.f32 %v198, %v201
    %vm203 = vweird.f32 %v182
    %vm204 = vweird.f32 %v198
    %vm205 = vmor %vm203, %vm204
    %v206 = vsel %vm205, %v198, %v202
    %v207 = vand.u32 2147483647, %v182
    %vm208 = vcmp.eq.f32.partialorder %v207, 8.507059e+37
    %v209 = vand.u32 %v182, 2147483648
    %v210 = vor.u32 1.1754944e-38, %v209
    %v211 = vsel %vm208, %v210, %v206
    %v212 = vmul.f32 1.0, %v211
    %v213 = vmul.f32 %v157, %v117
    %v214 = vmul.f32 %v172, %v119
    %v215 = vadd.f32 %v131, %v213
    %v216 = vadd.f32 %v132, %v214
    %v217 = vtanh.pop %v215
    %v218 = vtanh.pop %v216
    %v219 = vsub.f32 1.0, %v197
    %v220 = vsub.f32 1.0, %v212
    %v221 = vmul.f32 %v219, %v217
    %v222 = vmul.f32 %v220, %v218
    %v223 = vmul.f32 %v197, 0.0
    %v224 = vmul.f32 %v212, 0.0
    %v225 = vadd.f32 %v221, %v223
    %v226 = vadd.f32 %v222, %v224
    %v227 = vpack.c.bf16 %v226, %v225
    %229 = vset.pattern.permute.xlu0 0
    %230 = vperm.xlu0 %229, %v41
    %v231 = vpop.permute.xlu0 %230
    %v233 = vperm.slane %v231, 0
    %v235 = vsel %vm87, %v40, 0
    %237 = vmatpush.bf16.msra.mxu0 0
    %238 = vmatpush.bf16.msra.mxu0 0
    %239 = vmatpush.bf16.msra.mxu0 0
    %240 = vmatpush.bf16.msra.mxu0 0
    %241 = vmatpush.bf16.msra.mxu0 0
    %242 = vmatpush.bf16.msra.mxu0 0
    %243 = vmatpush.bf16.msra.mxu0 0
    %244 = vmatpush.bf16.msra.mxu0 %v227
    %245 = vmatmul.bf16.gmra.mxu0 %v235
    %v246 = vpop.f32.mrf.mxu0
    %v247 = vadd.f32 %v233, %v246
    %v248 = vpop.f32.mrf.mxu0
    %249 = vdwg.mxu0
    %v250 = vxor.u32 %v247, 2147483648
    %v251 = vmul.f32 %v250, 1.442695
    %v252 = vpow.pop %v251
    %v253 = vadd.f32 %v252, 1.0
    %v254 = vrcp.pop %v253
    %v255 = vmul.f32 %v253, %v254
    %v256 = vsub.f32 1.0, %v255
    %v257 = vmul.f32 %v254, %v256
    %v258 = vadd.f32 %v254, %v257
    %vm259 = vweird.f32 %v253
    %vm260 = vweird.f32 %v254
    %vm261 = vmor %vm259, %vm260
    %v262 = vsel %vm261, %v254, %v258
    %v263 = vand.u32 2147483647, %v253
    %vm264 = vcmp.eq.f32.partialorder %v263, 8.507059e+37
    %v265 = vand.u32 %v253, 2147483648
    %v266 = vor.u32 1.1754944e-38, %v265
    %v267 = vsel %vm264, %v266, %v262
    %v268 = vmul.f32 1.0, %v267
    %v269 = vld [vmem:[%s1] sm:$0x1]
    %v270 = vmul.f32 %v268, %v269
    %vm271 = vcmask 90112
    %272 = vst.msk [vmem:[#allocation3] sm:$0x1] %vm271, %v270
    %273 = vmatpush.bf16.msra.mxu0 0
    %274 = vmatpush.bf16.msra.mxu0 0
    %275 = vmatpush.bf16.msra.mxu0 0
    %276 = vmatpush.bf16.msra.mxu0 0
    %277 = vmatpush.bf16.msra.mxu0 0
    %278 = vmatpush.bf16.msra.mxu0 0
    %279 = vmatpush.bf16.msra.mxu0 0
    %280 = vmatpush.bf16.msra.mxu0 %v227
    %281 = vmatmul.bf16.gmra.mxu0 %v89
    %v282 = vpop.f32.mrf.mxu0
    %v283 = vadd.f32 %v45, %v282
    %v284 = vpop.f32.mrf.mxu0
    %v285 = vadd.f32 %v50, %v284
    %286 = vmatmul.bf16.gmra.mxu0 %v92
    %v287 = vpop.f32.mrf.mxu0
    %v288 = vadd.f32 %v55, %v287
    %v289 = vpop.f32.mrf.mxu0
    %v290 = vadd.f32 %v60, %v289
    %291 = vmatmul.bf16.gmra.mxu0 %v95
    %v292 = vpop.f32.mrf.mxu0
    %v293 = vadd.f32 %v65, %v292
    %v294 = vpop.f32.mrf.mxu0
    %v295 = vadd.f32 %v70, %v294
    %296 = vdwg.mxu0
    %s297 = scalar_lea.vmem %s0, 24
    %v298 = vld [vmem:[%s297] sm:$0xf]
    %v299 = vld [vmem:[%s297 + $0x4] sm:$0xf]
    %v300 = vld [vmem:[%s297 + $0x8] sm:$0xf]
    %v301 = vld [vmem:[%s297 + $0xc] sm:$0xf]
    %v302 = vld [vmem:[%s297 + $0x10] sm:$0xf]
    %v303 = vld [vmem:[%s297 + $0x14] sm:$0xf]
    %v304 = vunpack.c.l.bf16 %v298
    %v305 = vunpack.c.l.bf16 %v299
    %v306 = vunpack.c.l.bf16 %v300
    %v307 = vunpack.c.l.bf16 %v301
    %v308 = vunpack.c.l.bf16 %v302
    %v309 = vunpack.c.l.bf16 %v303
    %v310 = vadd.f32 %v304, %v283
    %v311 = vadd.f32 %v305, %v285
    %v312 = vxor.u32 %v310, 2147483648
    %v313 = vxor.u32 %v311, 2147483648
    %v314 = vmul.f32 %v312, 1.442695
    %v315 = vpow.pop %v314
    %v316 = vmul.f32 %v313, 1.442695
    %v317 = vpow.pop %v316
    %v318 = vadd.f32 %v315, 1.0
    %v319 = vadd.f32 %v317, 1.0
    %v320 = vrcp.pop %v318
    %v321 = vmul.f32 %v318, %v320
    %v322 = vsub.f32 1.0, %v321
    %v323 = vmul.f32 %v320, %v322
    %v324 = vadd.f32 %v320, %v323
    %vm325 = vweird.f32 %v318
    %vm326 = vweird.f32 %v320
    %vm327 = vmor %vm325, %vm326
    %v328 = vsel %vm327, %v320, %v324
    %v329 = vand.u32 2147483647, %v318
    %vm330 = vcmp.eq.f32.partialorder %v329, 8.507059e+37
    %v331 = vand.u32 %v318, 2147483648
    %v332 = vor.u32 1.1754944e-38, %v331
    %v333 = vsel %vm330, %v332, %v328
    %v334 = vmul.f32 1.0, %v333
    %v335 = vrcp.pop %v319
    %v336 = vmul.f32 %v319, %v335
    %v337 = vsub.f32 1.0, %v336
    %v338 = vmul.f32 %v335, %v337
    %v339 = vadd.f32 %v335, %v338
    %vm340 = vweird.f32 %v319
    %vm341 = vweird.f32 %v335
    %vm342 = vmor %vm340, %vm341
    %v343 = vsel %vm342, %v335, %v339
    %v344 = vand.u32 2147483647, %v319
    %vm345 = vcmp.eq.f32.partialorder %v344, 8.507059e+37
    %v346 = vand.u32 %v319, 2147483648
    %v347 = vor.u32 1.1754944e-38, %v346
    %v348 = vsel %vm345, %v347, %v343
    %v349 = vmul.f32 1.0, %v348
    %v350 = vadd.f32 %v306, %v288
    %v351 = vadd.f32 %v307, %v290
    %v352 = vxor.u32 %v350, 2147483648
    %v353 = vxor.u32 %v351, 2147483648
    %v354 = vmul.f32 %v352, 1.442695
    %v355 = vpow.pop %v354
    %v356 = vmul.f32 %v353, 1.442695
    %v357 = vpow.pop %v356
    %v358 = vadd.f32 %v355, 1.0
    %v359 = vadd.f32 %v357, 1.0
    %v360 = vrcp.pop %v358
    %v361 = vmul.f32 %v358, %v360
    %v362 = vsub.f32 1.0, %v361
    %v363 = vmul.f32 %v360, %v362
    %v364 = vadd.f32 %v360, %v363
    %vm365 = vweird.f32 %v358
    %vm366 = vweird.f32 %v360
    %vm367 = vmor %vm365, %vm366
    %v368 = vsel %vm367, %v360, %v364
    %v369 = vand.u32 2147483647, %v358
    %vm370 = vcmp.eq.f32.partialorder %v369, 8.507059e+37
    %v371 = vand.u32 %v358, 2147483648
    %v372 = vor.u32 1.1754944e-38, %v371
    %v373 = vsel %vm370, %v372, %v368
    %v374 = vmul.f32 1.0, %v373
    %v375 = vrcp.pop %v359
    %v376 = vmul.f32 %v359, %v375
    %v377 = vsub.f32 1.0, %v376
    %v378 = vmul.f32 %v375, %v377
    %v379 = vadd.f32 %v375, %v378
    %vm380 = vweird.f32 %v359
    %vm381 = vweird.f32 %v375
    %vm382 = vmor %vm380, %vm381
    %v383 = vsel %vm382, %v375, %v379
    %v384 = vand.u32 2147483647, %v359
    %vm385 = vcmp.eq.f32.partialorder %v384, 8.507059e+37
    %v386 = vand.u32 %v359, 2147483648
    %v387 = vor.u32 1.1754944e-38, %v386
    %v388 = vsel %vm385, %v387, %v383
    %v389 = vmul.f32 1.0, %v388
    %v390 = vmul.f32 %v334, %v293
    %v391 = vmul.f32 %v349, %v295
    %v392 = vadd.f32 %v308, %v390
    %v393 = vadd.f32 %v309, %v391
    %v394 = vtanh.pop %v392
    %v395 = vtanh.pop %v393
    %v396 = vsub.f32 1.0, %v374
    %v397 = vsub.f32 1.0, %v389
    %v398 = vmul.f32 %v396, %v394
    %v399 = vmul.f32 %v397, %v395
    %v400 = vmul.f32 %v374, %v225
    %v401 = vmul.f32 %v389, %v226
    %v402 = vadd.f32 %v398, %v400
    %v403 = vadd.f32 %v399, %v401
    %v404 = vpack.c.bf16 %v403, %v402
    %405 = vmatpush.bf16.msra.mxu0 0
    %406 = vmatpush.bf16.msra.mxu0 0
    %407 = vmatpush.bf16.msra.mxu0 0
    %408 = vmatpush.bf16.msra.mxu0 0
    %409 = vmatpush.bf16.msra.mxu0 0
    %410 = vmatpush.bf16.msra.mxu0 0
    %411 = vmatpush.bf16.msra.mxu0 0
    %412 = vmatpush.bf16.msra.mxu0 %v404
    %413 = vmatmul.bf16.gmra.mxu0 %v235
    %v414 = vpop.f32.mrf.mxu0
    %v415 = vadd.f32 %v233, %v414
    %v416 = vpop.f32.mrf.mxu0
    %417 = vdwg.mxu0
    %v418 = vxor.u32 %v415, 2147483648
    %v419 = vmul.f32 %v418, 1.442695
    %v420 = vpow.pop %v419
    %v421 = vadd.f32 %v420, 1.0
    %v422 = vrcp.pop %v421
    %v423 = vmul.f32 %v421, %v422
    %v424 = vsub.f32 1.0, %v423
    %v425 = vmul.f32 %v422, %v424
    %v426 = vadd.f32 %v422, %v425
    %vm427 = vweird.f32 %v421
    %vm428 = vweird.f32 %v422
    %vm429 = vmor %vm427, %vm428
    %v430 = vsel %vm429, %v422, %v426
    %v431 = vand.u32 2147483647, %v421
    %vm432 = vcmp.eq.f32.partialorder %v431, 8.507059e+37
    %v433 = vand.u32 %v421, 2147483648
    %v434 = vor.u32 1.1754944e-38, %v433
    %v435 = vsel %vm432, %v434, %v430
    %v436 = vmul.f32 1.0, %v435
    %v437 = vld [vmem:[%s1 + $0x1] sm:$0x1]
    %v438 = vmul.f32 %v436, %v437
    %439 = vst.msk [vmem:[#allocation3 + $0x1] sm:$0x1] %vm271, %v438
    // Predicated region
    $region26: #{bert_mtl_forward.4} parent=1 // pred_check
      _
    $region27: #{bert_mtl_forward.4} parent=1 // pred_check_branch
      %441 = sbr.rel (0) target = $region29
    $region28: #{bert_mtl_forward.4} parent=1 // pred_region
      %443 = vsyncadd [#allocation4], 0
      %s445 = sshll.u32 [#allocation3], 4
      %s446 = int_to_ptr.vmem [resolvable:$true] %s445
      %s447 = sshll.u32 %s6, 4
      %s448 = int_to_ptr.hbm [resolvable:$true] %s447
      %450 = dma.vmem_to_hbm [thread:$0]  %s446, 32, %s448, [#allocation4]
    $region29: #{bert_mtl_forward.4} parent=1 // pred_fallthru
      _
    // Predicated region
    $region30: #{bert_mtl_forward.4} parent=1 // pred_check
      _
    $region31: #{bert_mtl_forward.4} parent=1 // pred_check_branch
      %452 = sbr.rel (0) target = $region33
    $region32: #{bert_mtl_forward.4} parent=1 // pred_region
      %454 = dma.done [#allocation4], 32
    $region33: #{bert_mtl_forward.4} parent=1 // pred_fallthru
      _
    %455 = vsyncpa [#allocation4], 1

</llo_original>
